<compile_context>
chip_gen: v6e
topology: v6e:2x2x1
jax: 0.10.0
libtpu: 0.0.40
codegen_flags: <defaults>
</compile_context>

<pallas_src>
import math

import jax
import jax.numpy as jnp
from jax.experimental import pallas as pl
from jax.experimental.pallas import tpu as pltpu


_C1 = math.sqrt(2.0 / math.pi)            # sqrt(2/pi)
_C2 = 0.044715 * math.sqrt(2.0 / math.pi)  # 0.044715 * sqrt(2/pi)

# ~8 MiB per block. With in+out double-buffered -> ~32 MiB resident, which is
# inside v7x's 64 MiB physical VMEM and well inside v5e/v6e's 128 MiB; we lift
# the scoped limit explicitly below.
_TARGET_BLOCK_BYTES = 8 * 1024 * 1024
_VMEM_LIMIT_BYTES = 48 << 20


def _gelu_kernel(x_ref, o_ref):
    # f32 internal math (EUP tanh), dtype-preserving store.
    xf = x_ref[...].astype(jnp.float32)
    inner = xf * (_C1 + _C2 * (xf * xf))
    o_ref[...] = (xf * (0.5 + 0.5 * jnp.tanh(inner))).astype(o_ref.dtype)


def _gelu_jax(x):
    """Plain-JAX tanh-GELU (used for the tiny ragged tail and as reference)."""
    xf = x.astype(jnp.float32)
    y = xf * (0.5 + 0.5 * jnp.tanh(xf * (_C1 + _C2 * (xf * xf))))
    return y.astype(x.dtype)


def _round_up(a, m):
    return ((a + m - 1) // m) * m


def gelu(x):
    """Tanh-approximate GELU, elementwise, any shape."""
    orig_shape = x.shape
    n = x.size
    if n == 0:
        return x

    itemsize = jnp.dtype(x.dtype).itemsize
    # Dtype-native sublane multiple: 8 (f32), 16 (bf16), 32 (int8/fp8).
    sublane = max(8, 32 // itemsize)

    flat = x.reshape(-1)

    # Split into a 128-aligned bulk (Pallas) and a ragged tail (< 128 elems,
    # plain JAX).  No pad + slice round trip.
    bulk_n = (n // 128) * 128
    if bulk_n == 0:
        return _gelu_jax(flat).reshape(orig_shape)

    bulk = flat if bulk_n == n else flat[:bulk_n]

    # Lane-dense width: largest multiple of 128 that divides the bulk exactly.
    lane_width = 128
    for w in (4096, 2048, 1024, 512, 256, 128):
        if bulk_n % w == 0:
            lane_width = w
            break
    rows = bulk_n // lane_width
    x2d = bulk.reshape(rows, lane_width)

    # Row-block sizing: ~8 MiB per block, multiple of the sublane count.
    row_bytes = lane_width * itemsize
    row_block = max(sublane, (_TARGET_BLOCK_BYTES // row_bytes) // sublane * sublane)
    row_block = min(row_block, rows)  # full extent is always legal
    if rows >= 2 * sublane:
        # Never collapse to one block: keep grid >= 2 so v7x's two TensorCores
        # both get work on the "parallel" axis. (Half, rounded up to sublanes.)
        half = _round_up(pl.cdiv(rows, 2), sublane)
        row_block = min(row_block, half)
    grid = (pl.cdiv(rows, row_block),)

    cost = pl.CostEstimate(
        flops=8 * bulk_n,
        transcendentals=bulk_n,
        bytes_accessed=2 * bulk_n * itemsize,
    )

    out2d = pl.pallas_call(
        _gelu_kernel,
        out_shape=jax.ShapeDtypeStruct((rows, lane_width), x.dtype),
        grid_spec=pltpu.PrefetchScalarGridSpec(
            num_scalar_prefetch=0,
            grid=grid,
            in_specs=[pl.BlockSpec((row_block, lane_width), lambda i: (i, 0))],
            out_specs=pl.BlockSpec((row_block, lane_width), lambda i: (i, 0)),
        ),
        compiler_params=pltpu.CompilerParams(
            dimension_semantics=("parallel",),
            vmem_limit_bytes=_VMEM_LIMIT_BYTES,
        ),
        cost_estimate=cost,
    )(x2d)

    out_flat = out2d.reshape(-1)
    if bulk_n != n:
        out_flat = jnp.concatenate([out_flat, _gelu_jax(flat[bulk_n:])])
    return out_flat.reshape(orig_shape)


def _gelu_ref(x):
    xf = x.astype(jnp.float32)
    return (
        0.5 * xf * (1.0 + jnp.tanh(_C1 * (xf + 0.044715 * xf ** 3)))
    ).astype(x.dtype)


if __name__ == "__main__":
    key = jax.random.PRNGKey(0)

    # Small shape consistent with the module's usage (batch, seq, hidden).
    x = jax.random.normal(key, (2, 8, 32), dtype=jnp.float32)
    out = gelu(x)
    jax.block_until_ready(out)
    assert out.shape == x.shape and out.dtype == x.dtype
    assert jnp.allclose(out, _gelu_ref(x), atol=1e-5, rtol=1e-5)

    # Lane-dense, multi-block path (grid >= 2 -> exercises megacore split).
    x_big = jax.random.normal(jax.random.PRNGKey(1), (4, 128, 1024), dtype=jnp.float32)
    out_big = gelu(x_big)
    jax.block_until_ready(out_big)
    assert jnp.allclose(out_big, _gelu_ref(x_big), atol=1e-5, rtol=1e-5)

    # Ragged (non-multiple-of-128) path: 128-aligned bulk via Pallas + JAX tail.
    x_odd = jax.random.normal(jax.random.PRNGKey(2), (3, 7, 33), dtype=jnp.float32)
    out_odd = gelu(x_odd)
    jax.block_until_ready(out_odd)
    assert jnp.allclose(out_odd, _gelu_ref(x_odd), atol=1e-5, rtol=1e-5)

    print("KERNEL_OK")
</pallas_src>

<mosaic_0001>
module attributes {stable_mosaic.version = 11 : i64} {
  func.func @_gelu_kernel(%arg0: i32, %arg1: memref<1x512xf32, #tpu.memory_space<vmem>>, %arg2: memref<1x512xf32, #tpu.memory_space<vmem>>) attributes {dimension_semantics = [#tpu.dimension_semantics<parallel>], iteration_bounds = array<i64: 1>, scalar_prefetch = 0 : i64, scratch_operands = 0 : i64, tpu.core_type = #tpu.core_type<tc>, window_params = [{transform_indices = @transform_0, window_bounds = array<i64: 1, 512>}, {transform_indices = @transform_1, window_bounds = array<i64: 1, 512>}]} {
    %c0 = arith.constant 0 : index
    %c0_0 = arith.constant 0 : index
    %0 = vector.load %arg1[%c0, %c0_0] : memref<1x512xf32, #tpu.memory_space<vmem>>, vector<1x512xf32>
    %1 = arith.mulf %0, %0 : vector<1x512xf32>
    %cst = arith.constant 0.0356774069 : f32
    %2 = vector.broadcast %cst : f32 to vector<1x512xf32>
    %3 = arith.mulf %2, %1 : vector<1x512xf32>
    %cst_1 = arith.constant 0.797884583 : f32
    %4 = vector.broadcast %cst_1 : f32 to vector<1x512xf32>
    %5 = arith.addf %4, %3 : vector<1x512xf32>
    %6 = arith.mulf %0, %5 : vector<1x512xf32>
    %7 = math.tanh %6 : vector<1x512xf32>
    %cst_2 = arith.constant 5.000000e-01 : f32
    %8 = vector.broadcast %cst_2 : f32 to vector<1x512xf32>
    %9 = arith.mulf %8, %7 : vector<1x512xf32>
    %cst_3 = arith.constant 5.000000e-01 : f32
    %10 = vector.broadcast %cst_3 : f32 to vector<1x512xf32>
    %11 = arith.addf %10, %9 : vector<1x512xf32>
    %12 = arith.mulf %0, %11 : vector<1x512xf32>
    %c0_4 = arith.constant 0 : index
    %c0_5 = arith.constant 0 : index
    %13 = vector.load %arg2[%c0_4, %c0_5] : memref<1x512xf32, #tpu.memory_space<vmem>>, vector<1x512xf32>
    tpu.vector_store %arg2[%c0_4, %c0_5], %12 {strides = array<i32>} : memref<1x512xf32, #tpu.memory_space<vmem>>, vector<1x512xf32>,
    return
  }
  func.func @transform_0(%arg0: i32) -> (i32, i32) {
    %c0_i32 = arith.constant 0 : i32
    %c0_i32_0 = arith.constant 0 : i32
    return %arg0, %c0_i32 : i32, i32
  }
  func.func @transform_1(%arg0: i32) -> (i32, i32) {
    %c0_i32 = arith.constant 0 : i32
    %c0_i32_0 = arith.constant 0 : i32
    return %arg0, %c0_i32 : i32, i32
  }
}

</mosaic_0001>

<llo_original>
// kernel: tpu_custom_call.1
$region0: #{tpu_custom_call.1}
  #allocation0 [shape = 'u32[]', space=smem, size = 0x4, offset = 0x4, fixed_abs, tag = 'smem constant byte address 0x4 - core index']
  #allocation1 [shape = 'u32[144,128]{1,0:T(1,128)}', space=vmem, size = 0x12000, scoped, tag = 'internal scratch']
  %s0 = inlined_call_operand.hbm [shape: f32[1,512], index: 0, kind: input, shape index: {}]
  %s1 = inlined_call_operand.hbm [shape: f32[1,512], index: 1, kind: output, shape index: {}]
  %s2 = sld [smem:[#allocation0]]
  $region18: #{tpu_custom_call.1} parent=0
    _
  %s4 = ssub.s32 1, %s2
  %s5 = scalar_select 0, %s4, %s2
  $region1: #{tpu_custom_call.1} parent=0
    #allocation2 [shape = 'u8[2048]{0}', space=vmem, size = 0x800, scoped, tag = 'input window, operand 0, single buffered']
    #allocation3 [shape = 's32[1]{0}', space=sflag, size = 0x4, scoped, tag = 'scoped memory for tpu_custom_call.1']
    #allocation4 [shape = 's32[1]{0}', space=sflag, size = 0x4, scoped, tag = 'scoped memory for tpu_custom_call.1']
    #allocation5 [shape = 'u8[2048]{0}', space=vmem, size = 0x800, scoped, tag = 'output window, operand 0, single buffered']
    %6 = vsyncpa [#allocation3], 0
    %7 = vsyncpa [#allocation4], 0
    // Predicated region
    $region2: #{tpu_custom_call.1} parent=1 // pred_check
      _
    $region3: #{tpu_custom_call.1} parent=1 // pred_check_branch
      %9 = sbr.rel (0) target = $region5
    $region4: #{tpu_custom_call.1} parent=1 // pred_region
      %s11 = ssub.s32 64, 64
      %12 = vsyncadd [#allocation3], %s11
      %s14 = sshll.u32 [#allocation2], 4
      %s15 = int_to_ptr.vmem [resolvable:$true] %s14
      %17 = dma.hbm_to_vmem [thread:$0]  %s0, 64, %s15, [#allocation3]
    $region5: #{tpu_custom_call.1} parent=1 // pred_fallthru
      _
    // Predicated region
    $region6: #{tpu_custom_call.1} parent=1 // pred_check
      _
    $region7: #{tpu_custom_call.1} parent=1 // pred_check_branch
      %19 = sbr.rel (0) target = $region9
    $region8: #{tpu_custom_call.1} parent=1 // pred_region
      %20 = dma.done [#allocation3], 64
    $region9: #{tpu_custom_call.1} parent=1 // pred_fallthru
      _
    %v21 = vld [vmem:[#allocation2] sm:$0xf]
    %v22 = vmul.f32 %v21, %v21
    %v23 = vmul.f32 %v22, 0.035677407
    %v24 = vadd.f32 %v23, 0.7978846
    %v25 = vmul.f32 %v21, %v24
    %v26 = vtanh.pop %v25
    %v27 = vmul.f32 %v26, 0.5
    %v28 = vadd.f32 %v27, 0.5
    %v29 = vmul.f32 %v21, %v28
    %v30 = vlaneseq
    %vm31 = vcmp.ge.s32.totalorder %v30, 0
    %vm32 = vcmp.lt.s32.totalorder %v30, 512
    %vm33 = vmand %vm31, %vm32
    %34 = vst.msk [vmem:[#allocation5] sm:$0xf] %vm33, %v29
    // Predicated region
    $region10: #{tpu_custom_call.1} parent=1 // pred_check
      _
    $region11: #{tpu_custom_call.1} parent=1 // pred_check_branch
      %36 = sbr.rel (0) target = $region13
    $region12: #{tpu_custom_call.1} parent=1 // pred_region
      %s38 = ssub.s32 64, 64
      %39 = vsyncadd [#allocation4], %s38
      %s41 = sshll.u32 [#allocation5], 4
      %s42 = int_to_ptr.vmem [resolvable:$true] %s41
      %44 = dma.vmem_to_hbm [thread:$0]  %s42, 64, %s1, [#allocation4]
    $region13: #{tpu_custom_call.1} parent=1 // pred_fallthru
      _
    // Predicated region
    $region14: #{tpu_custom_call.1} parent=1 // pred_check
      _
    $region15: #{tpu_custom_call.1} parent=1 // pred_check_branch
      %46 = sbr.rel (0) target = $region17
    $region16: #{tpu_custom_call.1} parent=1 // pred_region
      %47 = dma.done [#allocation4], 64
    $region17: #{tpu_custom_call.1} parent=1 // pred_fallthru
      _
    %48 = vsyncpa [#allocation3], 1
    %49 = vsyncpa [#allocation4], 1

</llo_original>
